<compile_context>
chip_gen: v6e
topology: v6e:2x2x1
jax: 0.10.0
libtpu: 0.0.40
codegen_flags: <defaults>
</compile_context>

<pallas_src>
import math

import jax
import jax.numpy as jnp
from jax.experimental import pallas as pl
from jax.experimental.pallas import tpu as pltpu

LANE = 128     # lane width (same on v5e/v6e/v7x)
SUBLANE = 8


def _round_up(x, m):
    return ((x + m - 1) // m) * m


# ----------------------------------------------------------------------------
# Kernels
# ----------------------------------------------------------------------------
def _hidden_stack(x, w1_ref, b1_ref, w2_ref, b2_ref, w3_ref, b3_ref):
    """state -> 128 -> 128 -> 256 hidden activations, f32 accumulator.

    Matmul operands are cast to the weight dtype (f32 or bf16); accumulation is
    always f32, and bias-add + ReLU run in f32 on the accumulator (native VPU
    path on v5e too)."""
    wdt = w1_ref.dtype
    h = jnp.dot(x.astype(wdt), w1_ref[...],
                preferred_element_type=jnp.float32) + b1_ref[...]
    h = jnp.maximum(h, 0.0)
    h = jnp.dot(h.astype(wdt), w2_ref[...],
                preferred_element_type=jnp.float32) + b2_ref[...]
    h = jnp.maximum(h, 0.0)
    h = jnp.dot(h.astype(wdt), w3_ref[...],
                preferred_element_type=jnp.float32) + b3_ref[...]
    h = jnp.maximum(h, 0.0)
    return h


def qnetwork_kernel_small(x_ref, w1_ref, b1_ref, w2_ref, b2_ref,
                          w3_ref, b3_ref, wf_ref, bf_ref, o_ref):
    """Tiny-batch path: single tile, output [bm, A_pad=128] (lane-padded)."""
    h = _hidden_stack(x_ref[...], w1_ref, b1_ref, w2_ref, b2_ref, w3_ref, b3_ref)
    out = jnp.dot(h.astype(wf_ref.dtype), wf_ref[...],
                  preferred_element_type=jnp.float32) + bf_ref[...]
    o_ref[...] = out.astype(o_ref.dtype)


def qnetwork_kernel_large(x_ref, w1_ref, b1_ref, w2_ref, b2_ref,
                          w3_ref, b3_ref, wfT_ref, bfT_ref, oT_ref):
    """Large-batch path: transposed final layer, output block [A8=8, bm]
    (last dim is the batch tile -> lane-dense, unmasked stores)."""
    h = _hidden_stack(x_ref[...], w1_ref, b1_ref, w2_ref, b2_ref, w3_ref, b3_ref)
    # out_T[a, m] = sum_k wfT[a, k] * h[m, k]   (contract both feature dims)
    out_T = jax.lax.dot_general(
        wfT_ref[...], h.astype(wfT_ref.dtype),
        dimension_numbers=(((1,), (1,)), ((), ())),
        preferred_element_type=jnp.float32) + bfT_ref[...]
    oT_ref[...] = out_T.astype(oT_ref.dtype)


# ----------------------------------------------------------------------------
# One-time parameter preparation (hoisted out of the forward pass).
# Zero-padding extra output columns / input rows keeps results bit-identical
# (ReLU(0) = 0 and zero weight rows contribute nothing).
# ----------------------------------------------------------------------------
def prepare_qnetwork_params(params, weights_dtype=jnp.bfloat16, lane=LANE):
    (w1, b1), (w2, b2), (w3, b3), (wf, bf) = params
    S = w1.shape[0]
    A = wf.shape[1]

    def pad_cols(w, b, to):
        p = to - w.shape[1]
        if p > 0:
            w = jnp.pad(w, ((0, 0), (0, p)))
            b = jnp.pad(b, ((0, 0), (0, p)))
        return w, b

    def pad_rows(w, to):
        p = to - w.shape[0]
        if p > 0:
            w = jnp.pad(w, ((0, p), (0, 0)))
        return w

    h1 = _round_up(w1.shape[1], lane)            # 64  -> 128
    w1, b1 = pad_cols(w1, b1, h1)
    w2 = pad_rows(w2, h1)
    h2 = _round_up(w2.shape[1], lane)            # 128 -> 128
    w2, b2 = pad_cols(w2, b2, h2)
    w3 = pad_rows(w3, h2)
    h3 = _round_up(w3.shape[1], lane)            # 256 -> 256
    w3, b3 = pad_cols(w3, b3, h3)
    wf = pad_rows(wf, h3)                        # [H3, A]

    a8 = _round_up(A, SUBLANE)                   # 4 -> 8   (large-batch path)
    a_pad = _round_up(A, lane)                   # 4 -> 128 (tiny-batch path)
    wfT = pad_rows(jnp.transpose(wf), a8)        # [A8, H3]
    bfT = pad_rows(jnp.transpose(bf), a8)        # [A8, 1]
    wf, bf = pad_cols(wf, bf, a_pad)             # [H3, A_pad], [1, A_pad]

    cast = lambda w: w.astype(weights_dtype)
    return {
        "w1": cast(w1), "b1": b1.astype(jnp.float32),
        "w2": cast(w2), "b2": b2.astype(jnp.float32),
        "w3": cast(w3), "b3": b3.astype(jnp.float32),
        "wf": cast(wf), "bf": bf.astype(jnp.float32),
        "wfT": cast(wfT), "bfT": bfT.astype(jnp.float32),
        "state_size": S, "action_size": A,
    }


# ----------------------------------------------------------------------------
# Forward wrapper
# ----------------------------------------------------------------------------
def qnetwork_forward(x, prepared, *, bm=512, transpose_threshold=512):
    """x: [B, state_size] f32. prepared: output of prepare_qnetwork_params().
    Returns [B, action_size] f32."""
    B, S = x.shape
    assert S == prepared["state_size"], "state_size mismatch"
    A = prepared["action_size"]
    w1, b1 = prepared["w1"], prepared["b1"]
    w2, b2 = prepared["w2"], prepared["b2"]
    w3, b3 = prepared["w3"], prepared["b3"]
    H1, H2, H3 = w1.shape[1], w2.shape[1], w3.shape[1]

    full_map = lambda i: (0, 0)
    x_map = lambda i: (i, 0)

    B8 = _round_up(max(B, SUBLANE), SUBLANE)

    if B8 < transpose_threshold:
        # --- tiny batch: one fat tile, 128-lane-padded action output --------
        wf, bf = prepared["wf"], prepared["bf"]
        A_out = wf.shape[1]
        bm_eff = B_pad = B8
        if B_pad != B:
            x = jnp.pad(x, ((0, B_pad - B), (0, 0)))
        w_bytes = sum(int(t.size) * t.dtype.itemsize
                      for t in (w1, b1, w2, b2, w3, b3, wf, bf))
        flops = 2 * B_pad * (S * H1 + H1 * H2 + H2 * H3 + H3 * A_out)
        cost = pl.CostEstimate(
            flops=int(flops), transcendentals=0,
            bytes_accessed=int(int(x.size) * 4 + B_pad * A_out * 4 + w_bytes))
        out = pl.pallas_call(
            qnetwork_kernel_small,
            out_shape=jax.ShapeDtypeStruct((B_pad, A_out), jnp.float32),
            grid_spec=pltpu.PrefetchScalarGridSpec(
                num_scalar_prefetch=0,
                grid=(1,),
                in_specs=[
                    pl.BlockSpec((bm_eff, S), x_map),
                    pl.BlockSpec(w1.shape, full_map), pl.BlockSpec(b1.shape, full_map),
                    pl.BlockSpec(w2.shape, full_map), pl.BlockSpec(b2.shape, full_map),
                    pl.BlockSpec(w3.shape, full_map), pl.BlockSpec(b3.shape, full_map),
                    pl.BlockSpec(wf.shape, full_map), pl.BlockSpec(bf.shape, full_map),
                ],
                out_specs=pl.BlockSpec((bm_eff, A_out), x_map),
            ),
            compiler_params=pltpu.CompilerParams(
                dimension_semantics=("parallel",)),
            cost_estimate=cost,
        )(x, w1, b1, w2, b2, w3, b3, wf, bf)
        return out[:B, :A]

    # --- large batch: transposed final layer, lane-dense (A8, bm) stores ----
    wfT, bfT = prepared["wfT"], prepared["bfT"]
    A8 = wfT.shape[0]
    bm = max(LANE, _round_up(bm, LANE))
    # Guarantee >= 2 grid steps so the "parallel" batch axis can shard across
    # v7x's two TensorCores (harmless on single-TC v5e/v6e).
    bm_eff = min(bm, _round_up(-(-B8 // 2), LANE))
    B_pad = _round_up(B, bm_eff)
    if B_pad != B:
        x = jnp.pad(x, ((0, B_pad - B), (0, 0)))
    grid = (B_pad // bm_eff,)

    w_bytes = sum(int(t.size) * t.dtype.itemsize
                  for t in (w1, b1, w2, b2, w3, b3, wfT, bfT))
    flops = 2 * B_pad * (S * H1 + H1 * H2 + H2 * H3 + H3 * A8)
    cost = pl.CostEstimate(
        flops=int(flops), transcendentals=0,
        bytes_accessed=int(int(x.size) * 4 + A8 * B_pad * 4 + w_bytes))

    out_T = pl.pallas_call(
        qnetwork_kernel_large,
        out_shape=jax.ShapeDtypeStruct((A8, B_pad), jnp.float32),
        grid_spec=pltpu.PrefetchScalarGridSpec(
            num_scalar_prefetch=0,
            grid=grid,
            in_specs=[
                pl.BlockSpec((bm_eff, S), x_map),
                pl.BlockSpec(w1.shape, full_map), pl.BlockSpec(b1.shape, full_map),
                pl.BlockSpec(w2.shape, full_map), pl.BlockSpec(b2.shape, full_map),
                pl.BlockSpec(w3.shape, full_map), pl.BlockSpec(b3.shape, full_map),
                pl.BlockSpec(wfT.shape, full_map), pl.BlockSpec(bfT.shape, full_map),
            ],
            out_specs=pl.BlockSpec((A8, bm_eff), lambda i: (0, i)),
        ),
        compiler_params=pltpu.CompilerParams(
            dimension_semantics=("parallel",)),
        cost_estimate=cost,
    )(x, w1, b1, w2, b2, w3, b3, wfT, bfT)

    return jnp.transpose(out_T[:A, :B])


# ----------------------------------------------------------------------------
# Init (mimics PyTorch nn.Linear default: U(-1/sqrt(fan_in), 1/sqrt(fan_in)))
# ----------------------------------------------------------------------------
def init_qnetwork_params(key, state_size, action_size):
    num_layers = 2
    init_hidden = 64
    dims = [state_size, init_hidden]
    for i in range(num_layers):
        dims.append(init_hidden * 2 ** (i + 1))
    dims.append(action_size)  # [S, 64, 128, 256, A]

    params = []
    for fan_in, fan_out in zip(dims[:-1], dims[1:]):
        key, kw, kb = jax.random.split(key, 3)
        bound = 1.0 / math.sqrt(fan_in)
        w = jax.random.uniform(kw, (fan_in, fan_out), jnp.float32, -bound, bound)
        b = jax.random.uniform(kb, (1, fan_out), jnp.float32, -bound, bound)
        params.append((w, b))
    return params


def qnetwork_reference(x, params):
    h = x
    for w, b in params[:-1]:
        h = jnp.maximum(h @ w + b, 0.0)
    wf, bf = params[-1]
    return h @ wf + bf


if __name__ == "__main__":
    key = jax.random.PRNGKey(0)
    state_size = 8
    action_size = 4

    kp, kx1, kx2, kx3 = jax.random.split(key, 4)
    params = init_qnetwork_params(kp, state_size, action_size)

    # Padding / casting done ONCE (hoisted out of the per-call path).
    prep_f32 = prepare_qnetwork_params(params, weights_dtype=jnp.float32)
    prep_bf16 = prepare_qnetwork_params(params)           # bf16 is the default

    # --- tiny batch: single fat tile, padded-lane output, exact f32 ---------
    x_small = jax.random.normal(kx1, (16, state_size), jnp.float32)
    out = jax.block_until_ready(qnetwork_forward(x_small, prep_f32))
    ref = qnetwork_reference(x_small, params)
    assert out.shape == (16, action_size)
    assert jnp.allclose(out, ref, atol=1e-4, rtol=1e-4), "small f32 mismatch"

    # --- non-multiple batch below the transpose threshold -------------------
    x_mid = jax.random.normal(kx2, (300, state_size), jnp.float32)
    out_mid = jax.block_until_ready(qnetwork_forward(x_mid, prep_f32))
    ref_mid = qnetwork_reference(x_mid, params)
    assert out_mid.shape == (300, action_size)
    assert jnp.allclose(out_mid, ref_mid, atol=1e-4, rtol=1e-4), "mid f32 mismatch"

    # --- large batch: transposed final layer, >=2 parallel grid steps -------
    x_big = jax.random.normal(kx3, (1000, state_size), jnp.float32)
    out_big = jax.block_until_ready(qnetwork_forward(x_big, prep_f32, bm=512))
    ref_big = qnetwork_reference(x_big, params)
    assert out_big.shape == (1000, action_size)
    assert jnp.allclose(out_big, ref_big, atol=1e-4, rtol=1e-4), "large f32 mismatch"

    # --- bf16 weight path (default): f32 accumulate, loose tolerance --------
    out_bf = jax.block_until_ready(qnetwork_forward(x_small, prep_bf16))
    out_bf_big = jax.block_until_ready(qnetwork_forward(x_big, prep_bf16))
    assert out_bf.shape == (16, action_size)
    assert out_bf_big.shape == (1000, action_size)
    assert jnp.allclose(out_bf, ref, atol=1e-1, rtol=1e-1), "small bf16 mismatch"
    assert jnp.allclose(out_bf_big, ref_big, atol=1e-1, rtol=1e-1), "large bf16 mismatch"

    print("KERNEL_OK")
</pallas_src>

<mosaic_0001>
module attributes {stable_mosaic.version = 11 : i64} {
  func.func @qnetwork_kernel_small(%arg0: i32, %arg1: memref<16x8xf32, #tpu.memory_space<vmem>>, %arg2: memref<8x128xf32, #tpu.memory_space<vmem>>, %arg3: memref<1x128xf32, #tpu.memory_space<vmem>>, %arg4: memref<128x128xf32, #tpu.memory_space<vmem>>, %arg5: memref<1x128xf32, #tpu.memory_space<vmem>>, %arg6: memref<128x256xf32, #tpu.memory_space<vmem>>, %arg7: memref<1x256xf32, #tpu.memory_space<vmem>>, %arg8: memref<256x128xf32, #tpu.memory_space<vmem>>, %arg9: memref<1x128xf32, #tpu.memory_space<vmem>>, %arg10: memref<16x128xf32, #tpu.memory_space<vmem>>) attributes {dimension_semantics = [#tpu.dimension_semantics<parallel>], iteration_bounds = array<i64: 1>, scalar_prefetch = 0 : i64, scratch_operands = 0 : i64, tpu.core_type = #tpu.core_type<tc>, window_params = [{transform_indices = @transform_0, window_bounds = array<i64: 16, 8>}, {pipeline_mode = #tpu.pipeline_mode<synchronous>, transform_indices = @transform_1, window_bounds = array<i64: 8, 128>}, {pipeline_mode = #tpu.pipeline_mode<synchronous>, transform_indices = @transform_2, window_bounds = array<i64: 1, 128>}, {pipeline_mode = #tpu.pipeline_mode<synchronous>, transform_indices = @transform_3, window_bounds = array<i64: 128, 128>}, {pipeline_mode = #tpu.pipeline_mode<synchronous>, transform_indices = @transform_4, window_bounds = array<i64: 1, 128>}, {pipeline_mode = #tpu.pipeline_mode<synchronous>, transform_indices = @transform_5, window_bounds = array<i64: 128, 256>}, {pipeline_mode = #tpu.pipeline_mode<synchronous>, transform_indices = @transform_6, window_bounds = array<i64: 1, 256>}, {pipeline_mode = #tpu.pipeline_mode<synchronous>, transform_indices = @transform_7, window_bounds = array<i64: 256, 128>}, {pipeline_mode = #tpu.pipeline_mode<synchronous>, transform_indices = @transform_8, window_bounds = array<i64: 1, 128>}, {transform_indices = @transform_9, window_bounds = array<i64: 16, 128>}]} {
    %c0 = arith.constant 0 : index
    %c0_0 = arith.constant 0 : index
    %0 = vector.load %arg1[%c0, %c0_0] : memref<16x8xf32, #tpu.memory_space<vmem>>, vector<16x8xf32>
    %c0_1 = arith.constant 0 : index
    %c0_2 = arith.constant 0 : index
    %1 = vector.load %arg2[%c0_1, %c0_2] : memref<8x128xf32, #tpu.memory_space<vmem>>, vector<8x128xf32>
    %cst = arith.constant dense<0.000000e+00> : vector<16x128xf32>
    %2 = tpu.matmul %0, %1, %cst {dimension_numbers = #tpu.dot_dimension_numbers<[1], [0], [0], [1], [0, 0, 1, 1], [], []>} : vector<16x8xf32>, vector<8x128xf32>, vector<16x128xf32> -> vector<16x128xf32>
    %c0_3 = arith.constant 0 : index
    %c0_4 = arith.constant 0 : index
    %3 = vector.load %arg3[%c0_3, %c0_4] : memref<1x128xf32, #tpu.memory_space<vmem>>, vector<1x128xf32>
    %4 = vector.broadcast %3 : vector<1x128xf32> to vector<16x128xf32>
    %5 = arith.addf %2, %4 : vector<16x128xf32>
    %cst_5 = arith.constant 0.000000e+00 : f32
    %6 = vector.broadcast %cst_5 : f32 to vector<16x128xf32>
    %7 = arith.maximumf %5, %6 : vector<16x128xf32>
    %c0_6 = arith.constant 0 : index
    %c0_7 = arith.constant 0 : index
    %8 = vector.load %arg4[%c0_6, %c0_7] : memref<128x128xf32, #tpu.memory_space<vmem>>, vector<128x128xf32>
    %cst_8 = arith.constant dense<0.000000e+00> : vector<16x128xf32>
    %9 = tpu.matmul %7, %8, %cst_8 {dimension_numbers = #tpu.dot_dimension_numbers<[1], [0], [0], [1], [0, 0, 1, 1], [], []>} : vector<16x128xf32>, vector<128x128xf32>, vector<16x128xf32> -> vector<16x128xf32>
    %c0_9 = arith.constant 0 : index
    %c0_10 = arith.constant 0 : index
    %10 = vector.load %arg5[%c0_9, %c0_10] : memref<1x128xf32, #tpu.memory_space<vmem>>, vector<1x128xf32>
    %11 = vector.broadcast %10 : vector<1x128xf32> to vector<16x128xf32>
    %12 = arith.addf %9, %11 : vector<16x128xf32>
    %cst_11 = arith.constant 0.000000e+00 : f32
    %13 = vector.broadcast %cst_11 : f32 to vector<16x128xf32>
    %14 = arith.maximumf %12, %13 : vector<16x128xf32>
    %c0_12 = arith.constant 0 : index
    %c0_13 = arith.constant 0 : index
    %15 = vector.load %arg6[%c0_12, %c0_13] : memref<128x256xf32, #tpu.memory_space<vmem>>, vector<128x256xf32>
    %cst_14 = arith.constant dense<0.000000e+00> : vector<16x256xf32>
    %16 = tpu.matmul %14, %15, %cst_14 {dimension_numbers = #tpu.dot_dimension_numbers<[1], [0], [0], [1], [0, 0, 1, 1], [], []>} : vector<16x128xf32>, vector<128x256xf32>, vector<16x256xf32> -> vector<16x256xf32>
    %c0_15 = arith.constant 0 : index
    %c0_16 = arith.constant 0 : index
    %17 = vector.load %arg7[%c0_15, %c0_16] : memref<1x256xf32, #tpu.memory_space<vmem>>, vector<1x256xf32>
    %18 = vector.broadcast %17 : vector<1x256xf32> to vector<16x256xf32>
    %19 = arith.addf %16, %18 : vector<16x256xf32>
    %cst_17 = arith.constant 0.000000e+00 : f32
    %20 = vector.broadcast %cst_17 : f32 to vector<16x256xf32>
    %21 = arith.maximumf %19, %20 : vector<16x256xf32>
    %c0_18 = arith.constant 0 : index
    %c0_19 = arith.constant 0 : index
    %22 = vector.load %arg8[%c0_18, %c0_19] : memref<256x128xf32, #tpu.memory_space<vmem>>, vector<256x128xf32>
    %cst_20 = arith.constant dense<0.000000e+00> : vector<16x128xf32>
    %23 = tpu.matmul %21, %22, %cst_20 {dimension_numbers = #tpu.dot_dimension_numbers<[1], [0], [0], [1], [0, 0, 1, 1], [], []>} : vector<16x256xf32>, vector<256x128xf32>, vector<16x128xf32> -> vector<16x128xf32>
    %c0_21 = arith.constant 0 : index
    %c0_22 = arith.constant 0 : index
    %24 = vector.load %arg9[%c0_21, %c0_22] : memref<1x128xf32, #tpu.memory_space<vmem>>, vector<1x128xf32>
    %25 = vector.broadcast %24 : vector<1x128xf32> to vector<16x128xf32>
    %26 = arith.addf %23, %25 : vector<16x128xf32>
    %c0_23 = arith.constant 0 : index
    %c0_24 = arith.constant 0 : index
    %27 = vector.load %arg10[%c0_23, %c0_24] : memref<16x128xf32, #tpu.memory_space<vmem>>, vector<16x128xf32>
    tpu.vector_store %arg10[%c0_23, %c0_24], %26 {strides = array<i32>} : memref<16x128xf32, #tpu.memory_space<vmem>>, vector<16x128xf32>,
    return
  }
  func.func @transform_0(%arg0: i32) -> (i32, i32) {
    %c0_i32 = arith.constant 0 : i32
    %c0_i32_0 = arith.constant 0 : i32
    return %arg0, %c0_i32 : i32, i32
  }
  func.func @transform_1(%arg0: i32) -> (i32, i32) {
    %c0_i32 = arith.constant 0 : i32
    %c0_i32_0 = arith.constant 0 : i32
    %c0_i32_1 = arith.constant 0 : i32
    return %c0_i32, %c0_i32_0 : i32, i32
  }
  func.func @transform_2(%arg0: i32) -> (i32, i32) {
    %c0_i32 = arith.constant 0 : i32
    %c0_i32_0 = arith.constant 0 : i32
    %c0_i32_1 = arith.constant 0 : i32
    return %c0_i32, %c0_i32_0 : i32, i32
  }
  func.func @transform_3(%arg0: i32) -> (i32, i32) {
    %c0_i32 = arith.constant 0 : i32
    %c0_i32_0 = arith.constant 0 : i32
    %c0_i32_1 = arith.constant 0 : i32
    return %c0_i32, %c0_i32_0 : i32, i32
  }
  func.func @transform_4(%arg0: i32) -> (i32, i32) {
    %c0_i32 = arith.constant 0 : i32
    %c0_i32_0 = arith.constant 0 : i32
    %c0_i32_1 = arith.constant 0 : i32
    return %c0_i32, %c0_i32_0 : i32, i32
  }
  func.func @transform_5(%arg0: i32) -> (i32, i32) {
    %c0_i32 = arith.constant 0 : i32
    %c0_i32_0 = arith.constant 0 : i32
    %c0_i32_1 = arith.constant 0 : i32
    return %c0_i32, %c0_i32_0 : i32, i32
  }
  func.func @transform_6(%arg0: i32) -> (i32, i32) {
    %c0_i32 = arith.constant 0 : i32
    %c0_i32_0 = arith.constant 0 : i32
    %c0_i32_1 = arith.constant 0 : i32
    return %c0_i32, %c0_i32_0 : i32, i32
  }
  func.func @transform_7(%arg0: i32) -> (i32, i32) {
    %c0_i32 = arith.constant 0 : i32
    %c0_i32_0 = arith.constant 0 : i32
    %c0_i32_1 = arith.constant 0 : i32
    return %c0_i32, %c0_i32_0 : i32, i32
  }
  func.func @transform_8(%arg0: i32) -> (i32, i32) {
    %c0_i32 = arith.constant 0 : i32
    %c0_i32_0 = arith.constant 0 : i32
    %c0_i32_1 = arith.constant 0 : i32
    return %c0_i32, %c0_i32_0 : i32, i32
  }
  func.func @transform_9(%arg0: i32) -> (i32, i32) {
    %c0_i32 = arith.constant 0 : i32
    %c0_i32_0 = arith.constant 0 : i32
    return %arg0, %c0_i32 : i32, i32
  }
}

</mosaic_0001>

<llo_original>
// kernel: tpu_custom_call.1
$region0: #{tpu_custom_call.1}
  #allocation0 [shape = 'u32[]', space=smem, size = 0x4, offset = 0x4, fixed_abs, tag = 'smem constant byte address 0x4 - core index']
  #allocation1 [shape = 'u32[144,128]{1,0:T(1,128)}', space=vmem, size = 0x12000, scoped, tag = 'internal scratch']
  %s0 = inlined_call_operand.vmem [shape: f32[16,8], index: 0, kind: input, shape index: {}]
  %s1 = inlined_call_operand.vmem [shape: f32[8,128], index: 1, kind: input, shape index: {}]
  %s2 = inlined_call_operand.vmem [shape: f32[1,128], index: 2, kind: input, shape index: {}]
  %s3 = inlined_call_operand.hbm [shape: f32[128,128], index: 3, kind: input, shape index: {}]
  %s4 = inlined_call_operand.vmem [shape: f32[1,128], index: 4, kind: input, shape index: {}]
  %s5 = inlined_call_operand.hbm [shape: f32[128,256], index: 5, kind: input, shape index: {}]
  %s6 = inlined_call_operand.vmem [shape: f32[1,256], index: 6, kind: input, shape index: {}]
  %s7 = inlined_call_operand.hbm [shape: f32[256,128], index: 7, kind: input, shape index: {}]
  %s8 = inlined_call_operand.vmem [shape: f32[1,128], index: 8, kind: input, shape index: {}]
  %s9 = inlined_call_operand.hbm [shape: f32[16,128], index: 9, kind: output, shape index: {}]
  %s10 = sld [smem:[#allocation0]]
  $region58: #{tpu_custom_call.1} parent=0
    _
  %s12 = ssub.s32 1, %s10
  %s13 = scalar_select 0, %s12, %s10
  $region1: #{tpu_custom_call.1} parent=0
    #allocation2 [shape = 'u8[65536]{0}', space=vmem, size = 0x10000, scoped, tag = 'input window, operand 3, single buffered']
    #allocation3 [shape = 's32[1]{0}', space=sflag, size = 0x4, scoped, tag = 'scoped memory for tpu_custom_call.1']
    #allocation4 [shape = 's32[1]{0}', space=sflag, size = 0x4, scoped, tag = 'scoped memory for tpu_custom_call.1']
    #allocation5 [shape = 'u8[131072]{0}', space=vmem, size = 0x20000, scoped, tag = 'input window, operand 5, single buffered']
    #allocation6 [shape = 's32[1]{0}', space=sflag, size = 0x4, scoped, tag = 'scoped memory for tpu_custom_call.1']
    #allocation7 [shape = 'u8[131072]{0}', space=vmem, size = 0x20000, scoped, tag = 'input window, operand 7, single buffered']
    #allocation8 [shape = 'u8[8192]{0}', space=vmem, size = 0x2000, scoped, tag = 'output window, operand 0, single buffered']
    %14 = vsyncpa [#allocation3], 0
    %15 = vsyncpa [#allocation6], 0
    %16 = vsyncpa [#allocation4], 0
    // Predicated region
    $region2: #{tpu_custom_call.1} parent=1 // pred_check
      _
    $region3: #{tpu_custom_call.1} parent=1 // pred_check_branch
      %18 = sbr.rel (0) target = $region5
    $region4: #{tpu_custom_call.1} parent=1 // pred_region
      _
    $region5: #{tpu_custom_call.1} parent=1 // pred_fallthru
      _
    // Predicated region
    $region6: #{tpu_custom_call.1} parent=1 // pred_check
      _
    $region7: #{tpu_custom_call.1} parent=1 // pred_check_branch
      %20 = sbr.rel (0) target = $region9
    $region8: #{tpu_custom_call.1} parent=1 // pred_region
      _
    $region9: #{tpu_custom_call.1} parent=1 // pred_fallthru
      _
    // Predicated region
    $region10: #{tpu_custom_call.1} parent=1 // pred_check
      _
    $region11: #{tpu_custom_call.1} parent=1 // pred_check_branch
      %22 = sbr.rel (0) target = $region13
    $region12: #{tpu_custom_call.1} parent=1 // pred_region
      _
    $region13: #{tpu_custom_call.1} parent=1 // pred_fallthru
      _
    // Predicated region
    $region14: #{tpu_custom_call.1} parent=1 // pred_check
      _
    $region15: #{tpu_custom_call.1} parent=1 // pred_check_branch
      %24 = sbr.rel (0) target = $region17
    $region16: #{tpu_custom_call.1} parent=1 // pred_region
      %s26 = ssub.s32 2048, 2048
      %27 = vsyncadd [#allocation3], %s26
      %s28 = sshll.u32 [#allocation2], 4
      %s29 = int_to_ptr.vmem [resolvable:$true] %s28
      %34 = dma.hbm_to_vmem [thread:$0]  %s3, 2048, %s29, [#allocation3], 128, 128, 8
    $region17: #{tpu_custom_call.1} parent=1 // pred_fallthru
      _
    // Predicated region
    $region18: #{tpu_custom_call.1} parent=1 // pred_check
      _
    $region19: #{tpu_custom_call.1} parent=1 // pred_check_branch
      %36 = sbr.rel (0) target = $region21
    $region20: #{tpu_custom_call.1} parent=1 // pred_region
      _
    $region21: #{tpu_custom_call.1} parent=1 // pred_fallthru
      _
    // Predicated region
    $region22: #{tpu_custom_call.1} parent=1 // pred_check
      _
    $region23: #{tpu_custom_call.1} parent=1 // pred_check_branch
      %38 = sbr.rel (0) target = $region25
    $region24: #{tpu_custom_call.1} parent=1 // pred_region
      %s40 = ssub.s32 4096, 4096
      %41 = vsyncadd [#allocation6], %s40
      %s42 = sshll.u32 [#allocation5], 4
      %s43 = int_to_ptr.vmem [resolvable:$true] %s42
      %48 = dma.hbm_to_vmem [thread:$0]  %s5, 4096, %s43, [#allocation6], 256, 256, 16
    $region25: #{tpu_custom_call.1} parent=1 // pred_fallthru
      _
    // Predicated region
    $region26: #{tpu_custom_call.1} parent=1 // pred_check
      _
    $region27: #{tpu_custom_call.1} parent=1 // pred_check_branch
      %50 = sbr.rel (0) target = $region29
    $region28: #{tpu_custom_call.1} parent=1 // pred_region
      _
    $region29: #{tpu_custom_call.1} parent=1 // pred_fallthru
      _
    // Predicated region
    $region30: #{tpu_custom_call.1} parent=1 // pred_check
      _
    $region31: #{tpu_custom_call.1} parent=1 // pred_check_branch
      %52 = sbr.rel (0) target = $region33
    $region32: #{tpu_custom_call.1} parent=1 // pred_region
      %s54 = ssub.s32 4096, 4096
      %55 = vsyncadd [#allocation6], %s54
      %s56 = sshll.u32 [#allocation7], 4
      %s57 = int_to_ptr.vmem [resolvable:$true] %s56
      %62 = dma.hbm_to_vmem [thread:$0]  %s7, 4096, %s57, [#allocation6], 128, 128, 8
    $region33: #{tpu_custom_call.1} parent=1 // pred_fallthru
      _
    // Predicated region
    $region34: #{tpu_custom_call.1} parent=1 // pred_check
      _
    $region35: #{tpu_custom_call.1} parent=1 // pred_check_branch
      %64 = sbr.rel (0) target = $region37
    $region36: #{tpu_custom_call.1} parent=1 // pred_region
      _
    $region37: #{tpu_custom_call.1} parent=1 // pred_fallthru
      _
    // Predicated region
    $region38: #{tpu_custom_call.1} parent=1 // pred_check
      _
    $region39: #{tpu_custom_call.1} parent=1 // pred_check_branch
      %66 = sbr.rel (0) target = $region41
    $region40: #{tpu_custom_call.1} parent=1 // pred_region
      %67 = dma.done [#allocation3], 2048
    $region41: #{tpu_custom_call.1} parent=1 // pred_fallthru
      _
    // Predicated region
    $region42: #{tpu_custom_call.1} parent=1 // pred_check
      _
    $region43: #{tpu_custom_call.1} parent=1 // pred_check_branch
      %69 = sbr.rel (0) target = $region45
    $region44: #{tpu_custom_call.1} parent=1 // pred_region
      %70 = dma.done [#allocation6], 4096
    $region45: #{tpu_custom_call.1} parent=1 // pred_fallthru
      _
    // Predicated region
    $region46: #{tpu_custom_call.1} parent=1 // pred_check
      _
    $region47: #{tpu_custom_call.1} parent=1 // pred_check_branch
      %72 = sbr.rel (0) target = $region49
    $region48: #{tpu_custom_call.1} parent=1 // pred_region
      %73 = dma.done [#allocation6], 4096
    $region49: #{tpu_custom_call.1} parent=1 // pred_fallthru
      _
    %v74 = vld [vmem:[%s0] sm:$0xff]
    %v75 = vld [vmem:[%s0 + $0x8] sm:$0xff]
    %v76 = vld [vmem:[%s1] sm:$0xff]
    %v77 = vld [vmem:[%s2] sm:$0x1]
    %v79 = vlaneseq
    %v80 = vshrl.u32 %v79, 7
    %v81 = vsub.s32 0, %v80
    %v82 = vrot.slane %v77, %v81
    %vm84 = vcmask 64512
    %v86 = vsel %vm84, %v74, 0
    %v89 = vsel %vm84, %v75, 0
    %91 = vmatprep.subr.mxu0 0.0
    %92 = vmatpush1.msra.mxu0 0.0
    %93 = vmatprep.subr.mxu0 0.0
    %94 = vmatpush1.msra.mxu0 0.0
    %95 = vmatprep.subr.mxu0 0.0
    %96 = vmatpush1.msra.mxu0 0.0
    %97 = vmatprep.subr.mxu0 0.0
    %98 = vmatpush1.msra.mxu0 0.0
    %99 = vmatprep.subr.mxu0 0.0
    %100 = vmatpush1.msra.mxu0 0.0
    %101 = vmatprep.subr.mxu0 0.0
    %102 = vmatpush1.msra.mxu0 0.0
    %103 = vmatprep.subr.mxu0 0.0
    %104 = vmatpush1.msra.mxu0 0.0
    %105 = vmatprep.subr.mxu0 0.0
    %106 = vmatpush1.msra.mxu0 0.0
    %107 = vmatprep.subr.mxu0 0.0
    %108 = vmatpush1.msra.mxu0 0.0
    %109 = vmatprep.subr.mxu0 0.0
    %110 = vmatpush1.msra.mxu0 0.0
    %111 = vmatprep.subr.mxu0 0.0
    %112 = vmatpush1.msra.mxu0 0.0
    %113 = vmatprep.subr.mxu0 0.0
    %114 = vmatpush1.msra.mxu0 0.0
    %115 = vmatprep.subr.mxu0 0.0
    %116 = vmatpush1.msra.mxu0 0.0
    %117 = vmatprep.subr.mxu0 0.0
    %118 = vmatpush1.msra.mxu0 0.0
    %119 = vmatprep.subr.mxu0 0.0
    %120 = vmatpush1.msra.mxu0 0.0
    %121 = vmatprep.subr.mxu0 0.0
    %122 = vmatpush1.msra.mxu0 %v76
    %123 = vmatprep.subr.mxu0 0.0
    %124 = vmatpush2.msra.mxu0 0.0
    %125 = vmatprep.subr.mxu0 0.0
    %126 = vmatpush2.msra.mxu0 0.0
    %127 = vmatprep.subr.mxu0 0.0
    %128 = vmatpush2.msra.mxu0 0.0
    %129 = vmatprep.subr.mxu0 0.0
    %130 = vmatpush2.msra.mxu0 0.0
    %131 = vmatprep.subr.mxu0 0.0
    %132 = vmatpush2.msra.mxu0 0.0
    %133 = vmatprep.subr.mxu0 0.0
    %134 = vmatpush2.msra.mxu0 0.0
    %135 = vmatprep.subr.mxu0 0.0
    %136 = vmatpush2.msra.mxu0 0.0
    %137 = vmatprep.subr.mxu0 0.0
    %138 = vmatpush2.msra.mxu0 0.0
    %139 = vmatprep.subr.mxu0 0.0
    %140 = vmatpush2.msra.mxu0 0.0
    %141 = vmatprep.subr.mxu0 0.0
    %142 = vmatpush2.msra.mxu0 0.0
    %143 = vmatprep.subr.mxu0 0.0
    %144 = vmatpush2.msra.mxu0 0.0
    %145 = vmatprep.subr.mxu0 0.0
    %146 = vmatpush2.msra.mxu0 0.0
    %147 = vmatprep.subr.mxu0 0.0
    %148 = vmatpush2.msra.mxu0 0.0
    %149 = vmatprep.subr.mxu0 0.0
    %150 = vmatpush2.msra.mxu0 0.0
    %151 = vmatprep.subr.mxu0 0.0
    %152 = vmatpush2.msra.mxu0 0.0
    %153 = vmatprep.subr.mxu0 0.0
    %154 = vmatpush2.msra.mxu0 0.0
    %155 = vmatprep.mubr.f32.mxu0 0.0
    %156 = vmatmul.mubr.f32.gmra.mxu0 %v86
    %v157 = vpop.f32.mrf.mxu0
    %v158 = vadd.f32 %v82, %v157
    %v159 = vpop.f32.mrf.mxu0
    %160 = vmatprep.mubr.f32.mxu0 0.0
    %161 = vmatmul.mubr.f32.gmra.mxu0 %v89
    %v162 = vpop.f32.mrf.mxu0
    %v163 = vadd.f32 %v82, %v162
    %v164 = vpop.f32.mrf.mxu0
    %165 = vdwg.mxu0
    %v166 = vmax.f32 %v158, 0.0
    %v167 = vmax.f32 %v163, 0.0
    %v168 = vld [vmem:[#allocation2] sm:$0xff]
    %v169 = vld [vmem:[#allocation2 + $0x8] sm:$0xff]
    %v170 = vld [vmem:[#allocation2 + $0x10] sm:$0xff]
    %v171 = vld [vmem:[#allocation2 + $0x18] sm:$0xff]
    %v172 = vld [vmem:[#allocation2 + $0x20] sm:$0xff]
    %v173 = vld [vmem:[#allocation2 + $0x28] sm:$0xff]
    %v174 = vld [vmem:[#allocation2 + $0x30] sm:$0xff]
    %v175 = vld [vmem:[#allocation2 + $0x38] sm:$0xff]
    %v176 = vld [vmem:[#allocation2 + $0x40] sm:$0xff]
    %v177 = vld [vmem:[#allocation2 + $0x48] sm:$0xff]
    %v178 = vld [vmem:[#allocation2 + $0x50] sm:$0xff]
    %v179 = vld [vmem:[#allocation2 + $0x58] sm:$0xff]
    %v180 = vld [vmem:[#allocation2 + $0x60] sm:$0xff]
    %v181 = vld [vmem:[#allocation2 + $0x68] sm:$0xff]
    %v182 = vld [vmem:[#allocation2 + $0x70] sm:$0xff]
    %v183 = vld [vmem:[#allocation2 + $0x78] sm:$0xff]
    %v184 = vld [vmem:[%s4] sm:$0x1]
    %v186 = vlaneseq
    %v187 = vshrl.u32 %v186, 7
    %v188 = vsub.s32 0, %v187
    %v189 = vrot.slane %v184, %v188
    %191 = vmatprep.subr.mxu0 0.0
    %192 = vmatpush1.msra.mxu0 %v183
    %193 = vmatprep.subr.mxu0 0.0
    %194 = vmatpush1.msra.mxu0 %v182
    %195 = vmatprep.subr.mxu0 0.0
    %196 = vmatpush1.msra.mxu0 %v181
    %197 = vmatprep.subr.mxu0 0.0
    %198 = vmatpush1.msra.mxu0 %v180
    %199 = vmatprep.subr.mxu0 0.0
    %200 = vmatpush1.msra.mxu0 %v179
    %201 = vmatprep.subr.mxu0 0.0
    %202 = vmatpush1.msra.mxu0 %v178
    %203 = vmatprep.subr.mxu0 0.0
    %204 = vmatpush1.msra.mxu0 %v177
    %205 = vmatprep.subr.mxu0 0.0
    %206 = vmatpush1.msra.mxu0 %v176
    %207 = vmatprep.subr.mxu0 0.0
    %208 = vmatpush1.msra.mxu0 %v175
    %209 = vmatprep.subr.mxu0 0.0
    %210 = vmatpush1.msra.mxu0 %v174
    %211 = vmatprep.subr.mxu0 0.0
    %212 = vmatpush1.msra.mxu0 %v173
    %213 = vmatprep.subr.mxu0 0.0
    %214 = vmatpush1.msra.mxu0 %v172
    %215 = vmatprep.subr.mxu0 0.0
    %216 = vmatpush1.msra.mxu0 %v171
    %217 = vmatprep.subr.mxu0 0.0
    %218 = vmatpush1.msra.mxu0 %v170
    %219 = vmatprep.subr.mxu0 0.0
    %220 = vmatpush1.msra.mxu0 %v169
    %221 = vmatprep.subr.mxu0 0.0
    %222 = vmatpush1.msra.mxu0 %v168
    %223 = vmatprep.subr.mxu0 0.0
    %224 = vmatpush2.msra.mxu0 0.0
    %225 = vmatprep.subr.mxu0 0.0
    %226 = vmatpush2.msra.mxu0 0.0
    %227 = vmatprep.subr.mxu0 0.0
    %228 = vmatpush2.msra.mxu0 0.0
    %229 = vmatprep.subr.mxu0 0.0
    %230 = vmatpush2.msra.mxu0 0.0
    %231 = vmatprep.subr.mxu0 0.0
    %232 = vmatpush2.msra.mxu0 0.0
    %233 = vmatprep.subr.mxu0 0.0
    %234 = vmatpush2.msra.mxu0 0.0
    %235 = vmatprep.subr.mxu0 0.0
    %236 = vmatpush2.msra.mxu0 0.0
    %237 = vmatprep.subr.mxu0 0.0
    %238 = vmatpush2.msra.mxu0 0.0
    %239 = vmatprep.subr.mxu0 0.0
    %240 = vmatpush2.msra.mxu0 0.0
    %241 = vmatprep.subr.mxu0 0.0
    %242 = vmatpush2.msra.mxu0 0.0
    %243 = vmatprep.subr.mxu0 0.0
    %244 = vmatpush2.msra.mxu0 0.0
    %245 = vmatprep.subr.mxu0 0.0
    %246 = vmatpush2.msra.mxu0 0.0
    %247 = vmatprep.subr.mxu0 0.0
    %248 = vmatpush2.msra.mxu0 0.0
    %249 = vmatprep.subr.mxu0 0.0
    %250 = vmatpush2.msra.mxu0 0.0
    %251 = vmatprep.subr.mxu0 0.0
    %252 = vmatpush2.msra.mxu0 0.0
    %253 = vmatprep.subr.mxu0 0.0
    %254 = vmatpush2.msra.mxu0 0.0
    %255 = vmatprep.mubr.f32.mxu0 0.0
    %256 = vmatmul.mubr.f32.gmra.mxu0 %v166
    %v257 = vpop.f32.mrf.mxu0
    %v258 = vadd.f32 %v189, %v257
    %v259 = vpop.f32.mrf.mxu0
    %260 = vmatprep.mubr.f32.mxu0 0.0
    %261 = vmatmul.mubr.f32.gmra.mxu0 %v167
    %v262 = vpop.f32.mrf.mxu0
    %v263 = vadd.f32 %v189, %v262
    %v264 = vpop.f32.mrf.mxu0
    %265 = vdwg.mxu0
    %v266 = vmax.f32 %v258, 0.0
    %v267 = vmax.f32 %v263, 0.0
    %v268 = vld [vmem:[#allocation5] sm:$0xff]
    %v269 = vld [vmem:[#allocation5 + $0x8] sm:$0xff]
    %v270 = vld [vmem:[#allocation5 + $0x10] sm:$0xff]
    %v271 = vld [vmem:[#allocation5 + $0x18] sm:$0xff]
    %v272 = vld [vmem:[#allocation5 + $0x20] sm:$0xff]
    %v273 = vld [vmem:[#allocation5 + $0x28] sm:$0xff]
    %v274 = vld [vmem:[#allocation5 + $0x30] sm:$0xff]
    %v275 = vld [vmem:[#allocation5 + $0x38] sm:$0xff]
    %v276 = vld [vmem:[#allocation5 + $0x40] sm:$0xff]
    %v277 = vld [vmem:[#allocation5 + $0x48] sm:$0xff]
    %v278 = vld [vmem:[#allocation5 + $0x50] sm:$0xff]
    %v279 = vld [vmem:[#allocation5 + $0x58] sm:$0xff]
    %v280 = vld [vmem:[#allocation5 + $0x60] sm:$0xff]
    %v281 = vld [vmem:[#allocation5 + $0x68] sm:$0xff]
    %v282 = vld [vmem:[#allocation5 + $0x70] sm:$0xff]
    %v283 = vld [vmem:[#allocation5 + $0x78] sm:$0xff]
    %v284 = vld [vmem:[#allocation5 + $0x80] sm:$0xff]
    %v285 = vld [vmem:[#allocation5 + $0x88] sm:$0xff]
    %v286 = vld [vmem:[#allocation5 + $0x90] sm:$0xff]
    %v287 = vld [vmem:[#allocation5 + $0x98] sm:$0xff]
    %v288 = vld [vmem:[#allocation5 + $0xa0] sm:$0xff]
    %v289 = vld [vmem:[#allocation5 + $0xa8] sm:$0xff]
    %v290 = vld [vmem:[#allocation5 + $0xb0] sm:$0xff]
    %v291 = vld [vmem:[#allocation5 + $0xb8] sm:$0xff]
    %v292 = vld [vmem:[#allocation5 + $0xc0] sm:$0xff]
    %v293 = vld [vmem:[#allocation5 + $0xc8] sm:$0xff]
    %v294 = vld [vmem:[#allocation5 + $0xd0] sm:$0xff]
    %v295 = vld [vmem:[#allocation5 + $0xd8] sm:$0xff]
    %v296 = vld [vmem:[#allocation5 + $0xe0] sm:$0xff]
    %v297 = vld [vmem:[#allocation5 + $0xe8] sm:$0xff]
    %v298 = vld [vmem:[#allocation5 + $0xf0] sm:$0xff]
    %v299 = vld [vmem:[#allocation5 + $0xf8] sm:$0xff]
    %v300 = vld [vmem:[%s6] sm:$0x3]
    %v302 = vlaneseq
    %v303 = vshrl.u32 %v302, 7
    %v304 = vsub.s32 0, %v303
    %v305 = vrot.slane %v300, %v304
    %v306 = vlaneseq
    %v307 = vshrl.u32 %v306, 7
    %v308 = vsub.s32 1, %v307
    %v309 = vrot.slane %v300, %v308
    %312 = vmatprep.subr.mxu0 %v299
    %313 = vmatpush1.msra.mxu0 %v298
    %314 = vmatprep.subr.mxu0 %v297
    %315 = vmatpush1.msra.mxu0 %v296
    %316 = vmatprep.subr.mxu0 %v295
    %317 = vmatpush1.msra.mxu0 %v294
    %318 = vmatprep.subr.mxu0 %v293
    %319 = vmatpush1.msra.mxu0 %v292
    %320 = vmatprep.subr.mxu0 %v291
    %321 = vmatpush1.msra.mxu0 %v290
    %322 = vmatprep.subr.mxu0 %v289
    %323 = vmatpush1.msra.mxu0 %v288
    %324 = vmatprep.subr.mxu0 %v287
    %325 = vmatpush1.msra.mxu0 %v286
    %326 = vmatprep.subr.mxu0 %v285
    %327 = vmatpush1.msra.mxu0 %v284
    %328 = vmatprep.subr.mxu0 %v283
    %329 = vmatpush1.msra.mxu0 %v282
    %330 = vmatprep.subr.mxu0 %v281
    %331 = vmatpush1.msra.mxu0 %v280
    %332 = vmatprep.subr.mxu0 %v279
    %333 = vmatpush1.msra.mxu0 %v278
    %334 = vmatprep.subr.mxu0 %v277
    %335 = vmatpush1.msra.mxu0 %v276
    %336 = vmatprep.subr.mxu0 %v275
    %337 = vmatpush1.msra.mxu0 %v274
    %338 = vmatprep.subr.mxu0 %v273
    %339 = vmatpush1.msra.mxu0 %v272
    %340 = vmatprep.subr.mxu0 %v271
    %341 = vmatpush1.msra.mxu0 %v270
    %342 = vmatprep.subr.mxu0 %v269
    %343 = vmatpush1.msra.mxu0 %v268
    %344 = vmatprep.subr.mxu0 0.0
    %345 = vmatpush2.msra.mxu0 0.0
    %346 = vmatprep.subr.mxu0 0.0
    %347 = vmatpush2.msra.mxu0 0.0
    %348 = vmatprep.subr.mxu0 0.0
    %349 = vmatpush2.msra.mxu0 0.0
    %350 = vmatprep.subr.mxu0 0.0
    %351 = vmatpush2.msra.mxu0 0.0
    %352 = vmatprep.subr.mxu0 0.0
    %353 = vmatpush2.msra.mxu0 0.0
    %354 = vmatprep.subr.mxu0 0.0
    %355 = vmatpush2.msra.mxu0 0.0
    %356 = vmatprep.subr.mxu0 0.0
    %357 = vmatpush2.msra.mxu0 0.0
    %358 = vmatprep.subr.mxu0 0.0
    %359 = vmatpush2.msra.mxu0 0.0
    %360 = vmatprep.subr.mxu0 0.0
    %361 = vmatpush2.msra.mxu0 0.0
    %362 = vmatprep.subr.mxu0 0.0
    %363 = vmatpush2.msra.mxu0 0.0
    %364 = vmatprep.subr.mxu0 0.0
    %365 = vmatpush2.msra.mxu0 0.0
    %366 = vmatprep.subr.mxu0 0.0
    %367 = vmatpush2.msra.mxu0 0.0
    %368 = vmatprep.subr.mxu0 0.0
    %369 = vmatpush2.msra.mxu0 0.0
    %370 = vmatprep.subr.mxu0 0.0
    %371 = vmatpush2.msra.mxu0 0.0
    %372 = vmatprep.subr.mxu0 0.0
    %373 = vmatpush2.msra.mxu0 0.0
    %374 = vmatprep.subr.mxu0 0.0
    %375 = vmatpush2.msra.mxu0 0.0
    %376 = vmatprep.mubr.f32.mxu0 0.0
    %377 = vmatmul.mubr.f32.gmra.mxu0 %v266
    %v378 = vpop.f32.mrf.mxu0
    %v379 = vadd.f32 %v305, %v378
    %v380 = vpop.f32.mrf.mxu0
    %v381 = vadd.f32 %v309, %v380
    %382 = vmatprep.mubr.f32.mxu0 0.0
    %383 = vmatmul.mubr.f32.gmra.mxu0 %v267
    %v384 = vpop.f32.mrf.mxu0
    %v385 = vadd.f32 %v305, %v384
    %v386 = vpop.f32.mrf.mxu0
    %v387 = vadd.f32 %v309, %v386
    %388 = vdwg.mxu0
    %v389 = vmax.f32 %v379, 0.0
    %v390 = vmax.f32 %v381, 0.0
    %v391 = vmax.f32 %v385, 0.0
    %v392 = vmax.f32 %v387, 0.0
    %v393 = vld [vmem:[#allocation7] sm:$0xff]
    %v394 = vld [vmem:[#allocation7 + $0x8] sm:$0xff]
    %v395 = vld [vmem:[#allocation7 + $0x10] sm:$0xff]
    %v396 = vld [vmem:[#allocation7 + $0x18] sm:$0xff]
    %v397 = vld [vmem:[#allocation7 + $0x20] sm:$0xff]
    %v398 = vld [vmem:[#allocation7 + $0x28] sm:$0xff]
    %v399 = vld [vmem:[#allocation7 + $0x30] sm:$0xff]
    %v400 = vld [vmem:[#allocation7 + $0x38] sm:$0xff]
    %v401 = vld [vmem:[#allocation7 + $0x40] sm:$0xff]
    %v402 = vld [vmem:[#allocation7 + $0x48] sm:$0xff]
    %v403 = vld [vmem:[#allocation7 + $0x50] sm:$0xff]
    %v404 = vld [vmem:[#allocation7 + $0x58] sm:$0xff]
    %v405 = vld [vmem:[#allocation7 + $0x60] sm:$0xff]
    %v406 = vld [vmem:[#allocation7 + $0x68] sm:$0xff]
    %v407 = vld [vmem:[#allocation7 + $0x70] sm:$0xff]
    %v408 = vld [vmem:[#allocation7 + $0x78] sm:$0xff]
    %v409 = vld [vmem:[#allocation7 + $0x80] sm:$0xff]
    %v410 = vld [vmem:[#allocation7 + $0x88] sm:$0xff]
    %v411 = vld [vmem:[#allocation7 + $0x90] sm:$0xff]
    %v412 = vld [vmem:[#allocation7 + $0x98] sm:$0xff]
    %v413 = vld [vmem:[#allocation7 + $0xa0] sm:$0xff]
    %v414 = vld [vmem:[#allocation7 + $0xa8] sm:$0xff]
    %v415 = vld [vmem:[#allocation7 + $0xb0] sm:$0xff]
    %v416 = vld [vmem:[#allocation7 + $0xb8] sm:$0xff]
    %v417 = vld [vmem:[#allocation7 + $0xc0] sm:$0xff]
    %v418 = vld [vmem:[#allocation7 + $0xc8] sm:$0xff]
    %v419 = vld [vmem:[#allocation7 + $0xd0] sm:$0xff]
    %v420 = vld [vmem:[#allocation7 + $0xd8] sm:$0xff]
    %v421 = vld [vmem:[#allocation7 + $0xe0] sm:$0xff]
    %v422 = vld [vmem:[#allocation7 + $0xe8] sm:$0xff]
    %v423 = vld [vmem:[#allocation7 + $0xf0] sm:$0xff]
    %v424 = vld [vmem:[#allocation7 + $0xf8] sm:$0xff]
    %v425 = vld [vmem:[%s8] sm:$0x1]
    %v427 = vlaneseq
    %v428 = vshrl.u32 %v427, 7
    %v429 = vsub.s32 0, %v428
    %v430 = vrot.slane %v425, %v429
    %432 = vmatprep.subr.mxu0 0.0
    %433 = vmatpush1.msra.mxu0 %v408
    %434 = vmatprep.subr.mxu0 0.0
    %435 = vmatpush1.msra.mxu0 %v407
    %436 = vmatprep.subr.mxu0 0.0
    %437 = vmatpush1.msra.mxu0 %v406
    %438 = vmatprep.subr.mxu0 0.0
    %439 = vmatpush1.msra.mxu0 %v405
    %440 = vmatprep.subr.mxu0 0.0
    %441 = vmatpush1.msra.mxu0 %v404
    %442 = vmatprep.subr.mxu0 0.0
    %443 = vmatpush1.msra.mxu0 %v403
    %444 = vmatprep.subr.mxu0 0.0
    %445 = vmatpush1.msra.mxu0 %v402
    %446 = vmatprep.subr.mxu0 0.0
    %447 = vmatpush1.msra.mxu0 %v401
    %448 = vmatprep.subr.mxu0 0.0
    %449 = vmatpush1.msra.mxu0 %v400
    %450 = vmatprep.subr.mxu0 0.0
    %451 = vmatpush1.msra.mxu0 %v399
    %452 = vmatprep.subr.mxu0 0.0
    %453 = vmatpush1.msra.mxu0 %v398
    %454 = vmatprep.subr.mxu0 0.0
    %455 = vmatpush1.msra.mxu0 %v397
    %456 = vmatprep.subr.mxu0 0.0
    %457 = vmatpush1.msra.mxu0 %v396
    %458 = vmatprep.subr.mxu0 0.0
    %459 = vmatpush1.msra.mxu0 %v395
    %460 = vmatprep.subr.mxu0 0.0
    %461 = vmatpush1.msra.mxu0 %v394
    %462 = vmatprep.subr.mxu0 0.0
    %463 = vmatpush1.msra.mxu0 %v393
    %464 = vmatprep.subr.mxu0 0.0
    %465 = vmatpush2.msra.mxu0 %v424
    %466 = vmatprep.subr.mxu0 0.0
    %467 = vmatpush2.msra.mxu0 %v423
    %468 = vmatprep.subr.mxu0 0.0
    %469 = vmatpush2.msra.mxu0 %v422
    %470 = vmatprep.subr.mxu0 0.0
    %471 = vmatpush2.msra.mxu0 %v421
    %472 = vmatprep.subr.mxu0 0.0
    %473 = vmatpush2.msra.mxu0 %v420
    %474 = vmatprep.subr.mxu0 0.0
    %475 = vmatpush2.msra.mxu0 %v419
    %476 = vmatprep.subr.mxu0 0.0
    %477 = vmatpush2.msra.mxu0 %v418
    %478 = vmatprep.subr.mxu0 0.0
    %479 = vmatpush2.msra.mxu0 %v417
    %480 = vmatprep.subr.mxu0 0.0
    %481 = vmatpush2.msra.mxu0 %v416
    %482 = vmatprep.subr.mxu0 0.0
    %483 = vmatpush2.msra.mxu0 %v415
    %484 = vmatprep.subr.mxu0 0.0
    %485 = vmatpush2.msra.mxu0 %v414
    %486 = vmatprep.subr.mxu0 0.0
    %487 = vmatpush2.msra.mxu0 %v413
    %488 = vmatprep.subr.mxu0 0.0
    %489 = vmatpush2.msra.mxu0 %v412
    %490 = vmatprep.subr.mxu0 0.0
    %491 = vmatpush2.msra.mxu0 %v411
    %492 = vmatprep.subr.mxu0 0.0
    %493 = vmatpush2.msra.mxu0 %v410
    %494 = vmatprep.subr.mxu0 0.0
    %495 = vmatpush2.msra.mxu0 %v409
    %496 = vmatprep.mubr.f32.mxu0 %v390
    %497 = vmatmul.mubr.f32.gmra.mxu0 %v389
    %v498 = vpop.f32.mrf.mxu0
    %v499 = vadd.f32 %v430, %v498
    %v500 = vpop.f32.mrf.mxu0
    %501 = vmatprep.mubr.f32.mxu0 %v392
    %502 = vmatmul.mubr.f32.gmra.mxu0 %v391
    %v503 = vpop.f32.mrf.mxu0
    %v504 = vadd.f32 %v430, %v503
    %v505 = vpop.f32.mrf.mxu0
    %506 = vdwg.mxu0
    %507 = vst [vmem:[#allocation8] sm:$0xff] %v499
    %508 = vst [vmem:[#allocation8 + $0x8] sm:$0xff] %v504
    // Predicated region
    $region50: #{tpu_custom_call.1} parent=1 // pred_check
      _
    $region51: #{tpu_custom_call.1} parent=1 // pred_check_branch
      %510 = sbr.rel (0) target = $region53
    $region52: #{tpu_custom_call.1} parent=1 // pred_region
      %s512 = ssub.s32 256, 256
      %513 = vsyncadd [#allocation4], %s512
      %s514 = sshll.u32 [#allocation8], 4
      %s515 = int_to_ptr.vmem [resolvable:$true] %s514
      %520 = dma.vmem_to_hbm [thread:$0]  %s515, 256, %s9, [#allocation4], 128, 128, 8
    $region53: #{tpu_custom_call.1} parent=1 // pred_fallthru
      _
    // Predicated region
    $region54: #{tpu_custom_call.1} parent=1 // pred_check
      _
    $region55: #{tpu_custom_call.1} parent=1 // pred_check_branch
      %522 = sbr.rel (0) target = $region57
    $region56: #{tpu_custom_call.1} parent=1 // pred_region
      %523 = dma.done [#allocation4], 256
    $region57: #{tpu_custom_call.1} parent=1 // pred_fallthru
      _
    %524 = vsyncpa [#allocation3], 1
    %525 = vsyncpa [#allocation6], 1
    %526 = vsyncpa [#allocation4], 1

</llo_original>
